<compile_context>
chip_gen: v6e
topology: v6e:2x2x1
jax: 0.10.0
libtpu: 0.0.40
codegen_flags: <defaults>
</compile_context>

<pallas_src>
import functools
import math

import jax
import jax.numpy as jnp
from jax import lax
from jax.experimental import pallas as pl
from jax.experimental.pallas import tpu as pltpu


# ---------------------------------------------------------------------------
# small configuration helpers
# ---------------------------------------------------------------------------
def _vmem_budget_bytes():
    """Generation-specific VMEM cap (leave ~20% headroom for Mosaic scratch)."""
    cap = 64 * 2 ** 20  # conservative fallback (v7x per-core physical VMEM)
    try:
        info = pltpu.get_tpu_info()
        cap = int(getattr(info, "vmem_capacity_bytes", cap))
    except Exception:
        pass
    return int(cap * 0.8)


def _pick_seq_tile(L_pad, C, O, budget):
    """Largest 128-multiple tile dividing L_pad whose working set fits VMEM."""
    for tl in (1024, 512, 256, 128):
        if L_pad % tl:
            continue
        est = (2 * 2 * C * tl          # x tile (bf16, double buffered)
               + 2 * 2 * 2 * C * tl    # two kernel blocks (bf16, double buf)
               + 2 * 2 * C * tl        # (C, 2*TL) bf16 window scratch
               + 4 * C * tl            # f32 accumulator scratch
               + 2 * 4 * O * tl        # out tile (f32, double buffered)
               + 2 * O * C + 4 * (C + O))
        if est <= budget // 2:
            return tl
    return 128


def _pick_channel_group(C):
    for cg in (8, 4, 2, 1):
        if C % cg == 0:
            return cg
    return 1


def _pick_unroll(CG, TL):
    """Adaptive unroll: keep the tap-loop live set well under 64 vregs."""
    live_vregs = (3 * CG * TL * 4) // 4096   # f32 acc strip + f32 window strip
    if live_vregs <= 12:
        return 8
    if live_vregs <= 24:
        return 4
    return 2


@functools.lru_cache(maxsize=None)
def _roll_is_jnp_like():
    """Probe pltpu.roll once: does result[k] == x[k - shift] (jnp.roll-like)?"""
    def k(x_ref, o_ref):
        o_ref[...] = pltpu.roll(x_ref[...], shift=1, axis=1)

    x = jnp.tile(jnp.arange(128, dtype=jnp.float32)[None, :], (8, 1))
    y = pl.pallas_call(
        k, out_shape=jax.ShapeDtypeStruct((8, 128), jnp.float32))(x)
    return bool(y[0, 1] == 0.0)


# ---------------------------------------------------------------------------
# Pallas kernel 1: SIREN MLP generating the (reversed) depthwise conv kernel.
# Tiled over the tap axis; weights stay resident (constant index maps).
# Emits bf16, lane-dense over taps; taps past the true kernel length (K) are
# zeroed (they only pair with the zero-padded tail of the sequence).
# ---------------------------------------------------------------------------
def _siren_kernel(pos_ref, w1_ref, b1_ref, w2_ref, b2_ref, wo_ref, bo_ref,
                  out_ref, *, omega_0, K, TL):
    t = pl.program_id(0)
    p = pos_ref[...]                                              # (1, TL) f32
    h = jnp.sin(omega_0 * (w1_ref[...] * p + b1_ref[...]))        # (H, TL) f32
    z = jnp.dot(w2_ref[...], h.astype(jnp.bfloat16),              # MXU bf16
                preferred_element_type=jnp.float32) + b2_ref[...]
    h = jnp.sin(omega_0 * z)                                      # (H, TL)
    ck = jnp.dot(wo_ref[...], h.astype(jnp.bfloat16),             # MXU bf16
                 preferred_element_type=jnp.float32) + bo_ref[...]  # (C, TL)
    lane = lax.broadcasted_iota(jnp.int32, ck.shape, 1) + t * TL
    out_ref[...] = jnp.where(lane < K, ck, 0.0).astype(out_ref.dtype)


# ---------------------------------------------------------------------------
# Pallas kernel 2: fused causal depthwise conv + bias + 1x1 channel mixer.
# Triangular schedule: grid = (B, NSTEPS) with precomputed (i, j) pairs
# (j = 0..i).  The output tile i stays resident across its j-steps; the
# depthwise partial sums live in an f32 VMEM scratch; the channel mixer runs
# on the MXU at the finalize step (j == i).
# ---------------------------------------------------------------------------
def _conv_mix_kernel(i_ids, j_ids, dlo_ids, x_ref, wlo_ref, whi_ref, cb_ref,
                     mw_ref, mb_ref, o_ref, win_ref, acc_ref,
                     *, TL, CG, unroll, tap_shift):
    del dlo_ids  # only used by the index maps
    s = pl.program_id(1)
    i = i_ids[s]
    j = j_ids[s]
    C = acc_ref.shape[0]

    @pl.when(j == 0)
    def _init():
        acc_ref[...] = jnp.zeros_like(acc_ref)

    # Assemble the contiguous (C, 2*TL) reversed-kernel window for diagonal
    # d = i - j: lags [(d-1)*TL, (d+1)*TL).  The lower half is zero on the
    # diagonal (negative lags == causal mask).
    @pl.when(i == j)
    def _zero_lo():
        win_ref[:, :TL] = jnp.zeros((C, TL), win_ref.dtype)

    @pl.when(i > j)
    def _copy_lo():
        win_ref[:, :TL] = wlo_ref[...]

    win_ref[:, TL:] = whi_ref[...]

    # Depthwise taps on the VPU, strip-mined over CG-channel groups so the
    # carry (f32 acc strip + f32 window strip) stays small.  Realignment per
    # tap is a single XLU roll of the in-register window strip; the tap slice
    # itself is always the fixed, lane-aligned [TL:2*TL) columns.
    # Note: the per-tap (CG,1) x-column broadcast remains on the VALU/XLU; a
    # packed-bf16 multiply is a further v6e/v7x option (kept f32 here).
    for g in range(C // CG):
        r0 = g * CG
        wing0 = win_ref[r0:r0 + CG, :].astype(jnp.float32)        # (CG, 2*TL)

        def tap(q, carry, _r0=r0):
            accg, wing = carry
            xcol = x_ref[0, _r0:_r0 + CG, pl.ds(q, 1)].astype(jnp.float32)
            accg = accg + xcol * wing[:, TL:]
            wing = pltpu.roll(wing, shift=tap_shift, axis=1)
            return accg, wing

        accg, _ = lax.fori_loop(
            0, TL, tap, (jnp.zeros((CG, TL), jnp.float32), wing0),
            unroll=unroll)
        acc_ref[r0:r0 + CG, :] = acc_ref[r0:r0 + CG, :] + accg

    @pl.when(i == j)     # last reduction step of output tile i -> finalize
    def _finalize():
        y = acc_ref[...] + cb_ref[...]                            # (C, TL) f32
        out = jnp.dot(mw_ref[...], y.astype(jnp.bfloat16),        # MXU (O,C)@(C,TL)
                      preferred_element_type=jnp.float32) + mb_ref[...]
        o_ref[0] = out.astype(o_ref.dtype)


# ---------------------------------------------------------------------------
# Wrapper
# ---------------------------------------------------------------------------
def separable_ckconv_forward(x, params, *, omega_0):
    B, C, L = x.shape
    K = L                                      # kernel_size == 'same'
    O = params["mixer_w"].shape[0]
    H = params["w2"].shape[0]
    f32, bf16 = jnp.float32, jnp.bfloat16

    budget = _vmem_budget_bytes()
    L_pad = ((L + 127) // 128) * 128           # keep 128-lane alignment
    TL = _pick_seq_tile(L_pad, C, O, budget)
    I = L_pad // TL
    CG = _pick_channel_group(C)
    unroll = _pick_unroll(CG, TL)
    tap_shift = 1 if _roll_is_jnp_like() else 2 * TL - 1

    # ---- kernel generation (SIREN), tiled over the tap axis ----------------
    pos = jnp.linspace(-1.0, 1.0, K, dtype=f32)
    posr_pad = jnp.zeros((1, L_pad), f32).at[0, :K].set(pos[::-1])  # reversed

    siren_cost = pl.CostEstimate(
        flops=int(L_pad * (2 * H * H + 2 * H * C + 4 * H + 2 * C)),
        transcendentals=int(2 * H * L_pad),
        bytes_accessed=int(4 * L_pad + 16 * H + 2 * (H * H + C * H) + 4 * C
                           + 2 * C * L_pad))
    wrp = pl.pallas_call(
        functools.partial(_siren_kernel, omega_0=omega_0, K=K, TL=TL),
        out_shape=jax.ShapeDtypeStruct((C, L_pad), bf16),
        grid=(I,),
        in_specs=[
            pl.BlockSpec((1, TL), lambda t: (0, t)),
            pl.BlockSpec((H, 1), lambda t: (0, 0)),
            pl.BlockSpec((H, 1), lambda t: (0, 0)),
            pl.BlockSpec((H, H), lambda t: (0, 0)),
            pl.BlockSpec((H, 1), lambda t: (0, 0)),
            pl.BlockSpec((C, H), lambda t: (0, 0)),
            pl.BlockSpec((C, 1), lambda t: (0, 0)),
        ],
        out_specs=pl.BlockSpec((C, TL), lambda t: (0, t)),
        compiler_params=pltpu.CompilerParams(
            dimension_semantics=("parallel",), vmem_limit_bytes=budget),
        cost_estimate=siren_cost,
    )(posr_pad,
      params["w1"].T, params["b1"].T,
      params["w2"].T.astype(bf16), params["b2"].T,
      params["wo"].T.astype(bf16), params["bo"].T)

    # ---- triangular (i, j) schedule: only causal tile pairs are visited ----
    steps = [(oi, oj) for oi in range(I) for oj in range(oi + 1)]
    NS = len(steps)
    i_ids = jnp.asarray([p[0] for p in steps], jnp.int32)
    j_ids = jnp.asarray([p[1] for p in steps], jnp.int32)
    dlo_ids = jnp.asarray([max(p[0] - p[1] - 1, 0) for p in steps], jnp.int32)

    x_pad = x if L_pad == L else jnp.pad(x, ((0, 0), (0, 0), (0, L_pad - L)))
    x_bf = x_pad.astype(bf16)

    conv_cost = pl.CostEstimate(
        flops=int(B * NS * 2 * C * TL * TL + B * I * 2 * O * C * TL),
        transcendentals=0,
        bytes_accessed=int(B * NS * (2 * C * TL + 4 * C * TL)  # x + 2 kernel blks
                           + B * I * 4 * O * TL                # output (f32)
                           + 2 * O * C + 4 * (C + O)))

    out_pad = pl.pallas_call(
        functools.partial(_conv_mix_kernel, TL=TL, CG=CG, unroll=unroll,
                          tap_shift=tap_shift),
        out_shape=jax.ShapeDtypeStruct((B, O, L_pad), f32),
        grid_spec=pltpu.PrefetchScalarGridSpec(
            num_scalar_prefetch=3,
            grid=(B, NS),
            in_specs=[
                pl.BlockSpec((1, C, TL),
                             lambda b, s, ii, jj, dd: (b, 0, jj[s])),
                pl.BlockSpec((C, TL),
                             lambda b, s, ii, jj, dd: (0, dd[s])),
                pl.BlockSpec((C, TL),
                             lambda b, s, ii, jj, dd: (0, ii[s] - jj[s])),
                pl.BlockSpec((C, 1), lambda b, s, ii, jj, dd: (0, 0)),
                pl.BlockSpec((O, C), lambda b, s, ii, jj, dd: (0, 0)),
                pl.BlockSpec((O, 1), lambda b, s, ii, jj, dd: (0, 0)),
            ],
            out_specs=pl.BlockSpec((1, O, TL),
                                   lambda b, s, ii, jj, dd: (b, 0, ii[s])),
            scratch_shapes=[pltpu.VMEM((C, 2 * TL), bf16),
                            pltpu.VMEM((C, TL), f32)]),
        compiler_params=pltpu.CompilerParams(
            dimension_semantics=("parallel", "arbitrary"),
            vmem_limit_bytes=budget),
        cost_estimate=conv_cost,
    )(i_ids, j_ids, dlo_ids, x_bf, wrp, wrp,
      params["conv_bias"], params["mixer_w"].astype(bf16), params["mixer_b"])

    return out_pad if L_pad == L else out_pad[:, :, :L]


# ---------------------------------------------------------------------------
# Pure-JAX reference (same math & same bf16 storage/matmul-operand choices)
# ---------------------------------------------------------------------------
def reference_forward(x, params, *, omega_0):
    f32, bf16 = jnp.float32, jnp.bfloat16
    B, C, L = x.shape
    K = L

    def q(a):                       # bf16 storage / operand emulation
        return a.astype(bf16).astype(f32)

    def bdot(a, b):                 # bf16-operand, f32-accumulate matmul
        return jnp.dot(q(a), q(b))

    pos = jnp.linspace(-1.0, 1.0, K, dtype=f32).reshape(K, 1)
    h = jnp.sin(omega_0 * (pos * params["w1"] + params["b1"]))          # (K, H)
    h = jnp.sin(omega_0 * (bdot(h, params["w2"]) + params["b2"]))       # (K, H)
    ck = (bdot(h, params["wo"]) + params["bo"]).T                       # (C, K)
    ckq = q(ck)

    xq = q(x)
    xp = jnp.pad(xq, ((0, 0), (0, 0), (K - 1, 0)))
    idx = jnp.arange(L)[:, None] + jnp.arange(K)[None, :]
    win = xp[:, :, idx]                                                 # (B,C,L,K)
    y = jnp.einsum("bclk,ck->bcl", win, ckq) + params["conv_bias"][None]
    out = (jnp.einsum("oc,bcl->bol", q(params["mixer_w"]), q(y))
           + params["mixer_b"][None])
    return out


# ---------------------------------------------------------------------------
# Deterministic synthetic parameters (mirror the module's shapes)
# ---------------------------------------------------------------------------
def make_params(key, *, in_channels, out_channels, hidden, kernel_size,
                omega_0):
    C, O, H, K = in_channels, out_channels, hidden, kernel_size
    ks = jax.random.split(key, 9)
    w1 = jax.random.uniform(ks[0], (1, H), minval=-1.0, maxval=1.0,
                            dtype=jnp.float32)
    b1 = jax.random.uniform(ks[1], (1, H), minval=-1.0, maxval=1.0,
                            dtype=jnp.float32)
    bnd = math.sqrt(6.0 / H) / omega_0
    w2 = jax.random.uniform(ks[2], (H, H), minval=-bnd, maxval=bnd,
                            dtype=jnp.float32)
    b2 = jax.random.uniform(ks[3], (1, H), minval=-bnd, maxval=bnd,
                            dtype=jnp.float32)
    wo = jax.random.uniform(ks[4], (H, C), minval=-bnd, maxval=bnd,
                            dtype=jnp.float32)
    wo = wo * math.sqrt(1.0 / K)          # chang init (separable -> 1/K)
    bo = jax.random.uniform(ks[5], (1, C), minval=-bnd, maxval=bnd,
                            dtype=jnp.float32)
    bnd_m = math.sqrt(3.0 / C)
    mixer_w = jax.random.uniform(ks[6], (O, C), minval=-bnd_m, maxval=bnd_m,
                                 dtype=jnp.float32)
    # The module fills the conv/mixer biases with 0.0 at init; small nonzero
    # values are used here so the bias-add paths are exercised by the check.
    mixer_b = 0.1 * jax.random.normal(ks[7], (O, 1), dtype=jnp.float32)
    conv_bias = 0.1 * jax.random.normal(ks[8], (C, 1), dtype=jnp.float32)
    return dict(w1=w1, b1=b1, w2=w2, b2=b2, wo=wo, bo=bo,
                mixer_w=mixer_w, mixer_b=mixer_b, conv_bias=conv_bias)


if __name__ == "__main__":
    # Small shapes consistent with the module's 1-D forward; L is not a
    # multiple of 128 so the padding path and the multi-tile triangular
    # schedule (I = 5 sequence tiles) are both exercised.
    B, C, O, L, H = 2, 16, 16, 520, 32
    OMEGA_0 = 30.0

    key = jax.random.PRNGKey(0)
    kp, kx = jax.random.split(key)
    params = make_params(kp, in_channels=C, out_channels=O, hidden=H,
                         kernel_size=L, omega_0=OMEGA_0)
    x = jax.random.normal(kx, (B, C, L), dtype=jnp.float32)

    out = separable_ckconv_forward(x, params, omega_0=OMEGA_0)
    out = jax.block_until_ready(out)

    ref = reference_forward(x, params, omega_0=OMEGA_0)
    assert out.shape == (B, O, L), out.shape
    max_err = float(jnp.max(jnp.abs(out - ref)))
    assert jnp.allclose(out, ref, rtol=2e-3, atol=2e-3), max_err

    print("KERNEL_OK")
</pallas_src>

<mosaic_0001>
module attributes {stable_mosaic.version = 11 : i64} {
  func.func @k(%arg0: memref<8x128xf32, #tpu.memory_space<vmem>>, %arg1: memref<8x128xf32, #tpu.memory_space<vmem>>) attributes {dimension_semantics = [], scalar_prefetch = 0 : i64, scratch_operands = 0 : i64, tpu.core_type = #tpu.core_type<tc>} {
    %c0 = arith.constant 0 : index
    %c0_0 = arith.constant 0 : index
    %0 = vector.load %arg0[%c0, %c0_0] : memref<8x128xf32, #tpu.memory_space<vmem>>, vector<8x128xf32>
    %c1_i32 = arith.constant 1 : i32
    %1 = tpu.dynamic_rotate %0 by %c1_i32 dim 1 : vector<8x128xf32>, i32 -> vector<8x128xf32>
    %c0_1 = arith.constant 0 : index
    %c0_2 = arith.constant 0 : index
    %2 = vector.load %arg1[%c0_1, %c0_2] : memref<8x128xf32, #tpu.memory_space<vmem>>, vector<8x128xf32>
    tpu.vector_store %arg1[%c0_1, %c0_2], %1 {strides = array<i32>} : memref<8x128xf32, #tpu.memory_space<vmem>>, vector<8x128xf32>,
    return
  }
}

</mosaic_0001>

<llo_original>
// kernel: tpu_custom_call.1
$region0: #{tpu_custom_call.1}
  #allocation0 [shape = 'u32[]', space=smem, size = 0x4, offset = 0x4, fixed_abs, tag = 'smem constant byte address 0x4 - core index']
  #allocation1 [shape = 'u32[144,128]{1,0:T(1,128)}', space=vmem, size = 0x12000, scoped, tag = 'internal scratch']
  %s0 = inlined_call_operand.hbm [shape: f32[8,128], index: 0, kind: input, shape index: {}]
  %s1 = inlined_call_operand.hbm [shape: f32[8,128], index: 1, kind: output, shape index: {}]
  %s2 = sld [smem:[#allocation0]]
  $region18: #{tpu_custom_call.1} parent=0
    _
  %s4 = ssub.s32 1, %s2
  %s5 = scalar_select 0, %s4, %s2
  $region1: #{tpu_custom_call.1} parent=0
    #allocation2 [shape = 'u8[4096]{0}', space=vmem, size = 0x1000, scoped, tag = 'input window, operand 0, single buffered']
    #allocation3 [shape = 's32[1]{0}', space=sflag, size = 0x4, scoped, tag = 'scoped memory for tpu_custom_call.1']
    #allocation4 [shape = 's32[1]{0}', space=sflag, size = 0x4, scoped, tag = 'scoped memory for tpu_custom_call.1']
    #allocation5 [shape = 'u8[4096]{0}', space=vmem, size = 0x1000, scoped, tag = 'output window, operand 0, single buffered']
    %6 = vsyncpa [#allocation3], 0
    %7 = vsyncpa [#allocation4], 0
    // Predicated region
    $region2: #{tpu_custom_call.1} parent=1 // pred_check
      _
    $region3: #{tpu_custom_call.1} parent=1 // pred_check_branch
      %9 = sbr.rel (0) target = $region5
    $region4: #{tpu_custom_call.1} parent=1 // pred_region
      %s11 = ssub.s32 128, 128
      %12 = vsyncadd [#allocation3], %s11
      %s14 = sshll.u32 [#allocation2], 4
      %s15 = int_to_ptr.vmem [resolvable:$true] %s14
      %17 = dma.hbm_to_vmem [thread:$0]  %s0, 128, %s15, [#allocation3]
    $region5: #{tpu_custom_call.1} parent=1 // pred_fallthru
      _
    // Predicated region
    $region6: #{tpu_custom_call.1} parent=1 // pred_check
      _
    $region7: #{tpu_custom_call.1} parent=1 // pred_check_branch
      %19 = sbr.rel (0) target = $region9
    $region8: #{tpu_custom_call.1} parent=1 // pred_region
      %20 = dma.done [#allocation3], 128
    $region9: #{tpu_custom_call.1} parent=1 // pred_fallthru
      _
    %v21 = vld [vmem:[#allocation2] sm:$0xff]
    %22 = vrot.lane.b32.xlu0 %v21, 1
    %v23 = vpop.permute.xlu0 %22
    %24 = vst [vmem:[#allocation5] sm:$0xff] %v23
    // Predicated region
    $region10: #{tpu_custom_call.1} parent=1 // pred_check
      _
    $region11: #{tpu_custom_call.1} parent=1 // pred_check_branch
      %26 = sbr.rel (0) target = $region13
    $region12: #{tpu_custom_call.1} parent=1 // pred_region
      %s28 = ssub.s32 128, 128
      %29 = vsyncadd [#allocation4], %s28
      %s31 = sshll.u32 [#allocation5], 4
      %s32 = int_to_ptr.vmem [resolvable:$true] %s31
      %34 = dma.vmem_to_hbm [thread:$0]  %s32, 128, %s1, [#allocation4]
    $region13: #{tpu_custom_call.1} parent=1 // pred_fallthru
      _
    // Predicated region
    $region14: #{tpu_custom_call.1} parent=1 // pred_check
      _
    $region15: #{tpu_custom_call.1} parent=1 // pred_check_branch
      %36 = sbr.rel (0) target = $region17
    $region16: #{tpu_custom_call.1} parent=1 // pred_region
      %37 = dma.done [#allocation4], 128
    $region17: #{tpu_custom_call.1} parent=1 // pred_fallthru
      _
    %38 = vsyncpa [#allocation3], 1
    %39 = vsyncpa [#allocation4], 1

</llo_original>
